<compile_context>
chip_gen: v6e
topology: v6e:2x2x1
jax: 0.10.0
libtpu: 0.0.40
codegen_flags: <defaults>
</compile_context>

<pallas_src>
import jax
import jax.numpy as jnp
from jax.experimental import pallas as pl
from jax.experimental.pallas import tpu as pltpu

LANE = 128
MAX_HW_TILE = 2048   # lanes; per-step overhead is already well amortized here
FOLD_GROUP = 4       # sub-chunks folded in registers before each scratch RMW


def _make_kernel(C, HW, hw_tile, acc_w, n_sub, needs_mask, last_n_sub, tail_valid):
    inv_hw = 1.0 / float(HW)
    neg_inf = float("-inf")

    def load_chunk(x_ref, j):
        # Static (zero-cost) lane-aligned slice; the upcast to f32 happens here
        # so bf16 activations travel over HBM in their native width.
        return x_ref[:, j * acc_w:(j + 1) * acc_w].astype(jnp.float32)

    def fold(x_ref, sum_acc, max_acc, n_chunks, tail):
        # Fold `n_chunks` acc_w-wide sub-chunks into the persistent VMEM
        # accumulators.  Chunks are combined in small register groups
        # (FOLD_GROUP) so no (C, acc_w) value is forced live across the whole
        # tile, then RMW'd into scratch once per group.
        for g0 in range(0, n_chunks, FOLD_GROUP):
            g1 = min(g0 + FOLD_GROUP, n_chunks)
            part_s = None
            part_m = None
            for j in range(g0, g1):
                c = load_chunk(x_ref, j)
                if tail is not None and j == n_chunks - 1 and tail < acc_w:
                    # Ragged tail: only the final partial sub-chunk of the last
                    # grid step pays the iota/compare/select cost.
                    col = jax.lax.broadcasted_iota(jnp.int32, (C, acc_w), 1)
                    valid = col < tail
                    cs = jnp.where(valid, c, 0.0)
                    cm = jnp.where(valid, c, neg_inf)
                else:
                    cs = c
                    cm = c
                part_s = cs if part_s is None else part_s + cs
                part_m = cm if part_m is None else jnp.maximum(part_m, cm)
            sum_acc[...] = sum_acc[...] + part_s
            max_acc[...] = jnp.maximum(max_acc[...], part_m)

    def kernel(x_ref, w1_ref, b1_ref, w2_ref, b2_ref, out_ref, sum_acc, max_acc):
        # x_ref: (C, hw_tile) native dtype    w1_ref: (Cr, C)  b1_ref: (Cr, 1)
        # w2_ref: (C, Cr)  b2_ref: (C, 1)     out_ref: (C, 1) f32
        # sum_acc / max_acc: (C, acc_w) f32 scratch, persistent over the HW axis.
        k = pl.program_id(1)
        nk = pl.num_programs(1)

        @pl.when(k == 0)
        def _init():
            sum_acc[...] = jnp.zeros_like(sum_acc)
            max_acc[...] = jnp.full_like(max_acc, neg_inf)

        if not needs_mask:
            fold(x_ref, sum_acc, max_acc, n_sub, None)
        else:
            @pl.when(k < nk - 1)
            def _steady():
                fold(x_ref, sum_acc, max_acc, n_sub, None)

            @pl.when(k == nk - 1)
            def _last():
                fold(x_ref, sum_acc, max_acc, last_n_sub, tail_valid)

        @pl.when(k == nk - 1)
        def _finalize():
            # Single cross-lane (XLU) reduce per batch element.
            avg = jnp.sum(sum_acc[...], axis=-1, keepdims=True) * inv_hw  # (C, 1)
            mx = jnp.max(max_acc[...], axis=-1, keepdims=True)            # (C, 1)
            pooled = jnp.concatenate([avg, mx], axis=-1)                  # (C, 2)
            # Shared MLP (Linear -> ReLU -> Linear) on both pools at once,
            # column form: PyTorch weight layouts used directly, no transposes.
            h = jnp.dot(w1_ref[...], pooled,
                        preferred_element_type=jnp.float32) + b1_ref[...]  # (Cr, 2)
            h = jnp.maximum(h, 0.0)
            att = jnp.dot(w2_ref[...], h,
                          preferred_element_type=jnp.float32) + b2_ref[...]  # (C, 2)
            att_sum = att[:, 0:1] + att[:, 1:2]   # mlp(avg) + mlp(max), (C, 1)
            out_ref[...] = jax.nn.sigmoid(att_sum)

    return kernel


def channel_gate(x, w1, b1, w2, b2):
    """ChannelGate forward.

    x:  (B, C, H, W) any float dtype (streamed in its native width)
    w1: (Cr, C)  b1: (Cr,)   -- nn.Linear(C -> Cr), PyTorch layout
    w2: (C, Cr)  b2: (C,)    -- nn.Linear(Cr -> C)
    Returns the sigmoid attention scale, shape (B, C, 1, 1), float32.
    """
    B, C, H, W = x.shape
    Cr = w1.shape[0]
    HW = H * W

    x3 = x.reshape(B, C, HW)                    # keep native dtype on the wire
    w1f = w1.astype(jnp.float32)
    w2f = w2.astype(jnp.float32)
    b1c = b1.reshape(Cr, 1).astype(jnp.float32)
    b2c = b2.reshape(C, 1).astype(jnp.float32)

    itemsize = x.dtype.itemsize

    # Lane-aligned HW tile: capped at MAX_HW_TILE lanes and at a ~2 MiB
    # per-pipelined-buffer VMEM budget, so double-buffering + scratch + weights
    # stay well inside the scoped VMEM limit on all generations (incl. v7x).
    if HW <= LANE:
        hw_tile = HW
    else:
        budget_bytes = 2 * 1024 * 1024
        lanes_budget = max(LANE, (budget_bytes // (C * itemsize)) // LANE * LANE)
        hw_tile = int(min(MAX_HW_TILE, lanes_budget, (HW // LANE) * LANE))

    num_hw = pl.cdiv(HW, hw_tile)
    acc_w = min(hw_tile, LANE)
    n_sub = hw_tile // acc_w
    needs_mask = (HW % hw_tile) != 0
    if needs_mask:
        rem = HW - (num_hw - 1) * hw_tile            # valid elems in last block
        last_n_sub = pl.cdiv(rem, acc_w)             # sub-chunks actually read
        tail_valid = rem - (last_n_sub - 1) * acc_w  # valid lanes in final chunk
    else:
        last_n_sub = None
        tail_valid = None

    kernel = _make_kernel(C, HW, hw_tile, acc_w, n_sub, needs_mask,
                          last_n_sub, tail_valid)

    cost = pl.CostEstimate(
        flops=int(2 * B * C * HW + 8 * B * C * Cr),
        transcendentals=int(B * C),
        bytes_accessed=int(itemsize * B * C * HW
                           + 4 * (2 * C * Cr + C + Cr + B * C)),
    )

    out = pl.pallas_call(
        kernel,
        out_shape=jax.ShapeDtypeStruct((B, C, 1), jnp.float32),
        grid=(B, num_hw),
        in_specs=[
            pl.BlockSpec((None, C, hw_tile), lambda b, k: (b, 0, k)),  # x (streamed)
            pl.BlockSpec((Cr, C), lambda b, k: (0, 0)),                # w1 (resident)
            pl.BlockSpec((Cr, 1), lambda b, k: (0, 0)),                # b1
            pl.BlockSpec((C, Cr), lambda b, k: (0, 0)),                # w2
            pl.BlockSpec((C, 1), lambda b, k: (0, 0)),                 # b2
        ],
        out_specs=pl.BlockSpec((None, C, 1), lambda b, k: (b, 0, 0)),
        scratch_shapes=[
            pltpu.VMEM((C, acc_w), jnp.float32),   # running sum
            pltpu.VMEM((C, acc_w), jnp.float32),   # running max
        ],
        compiler_params=pltpu.CompilerParams(
            dimension_semantics=("parallel", "arbitrary"),
            vmem_limit_bytes=32 * 1024 * 1024,
        ),
        cost_estimate=cost,
    )(x3, w1f, b1c, w2f, b2c)

    return out.reshape(B, C, 1, 1)


def _reference(x, w1, b1, w2, b2):
    """Pure-JAX reference mirroring the PyTorch forward exactly (f32 math)."""
    xf = x.astype(jnp.float32)
    avg_pool = jnp.mean(xf, axis=(2, 3))
    max_pool = jnp.max(xf, axis=(2, 3))

    def mlp(p):
        h = jnp.maximum(p @ w1.T + b1, 0.0)
        return h @ w2.T + b2

    att = mlp(avg_pool) + mlp(max_pool)
    return jax.nn.sigmoid(att)[:, :, None, None]


if __name__ == "__main__":
    # Shapes consistent with the module: gate_channels=20, reduction_ratio=10.
    B, C, H, W = 2, 20, 16, 16
    reduction_ratio = 10
    Cr = C // reduction_ratio  # 2

    key = jax.random.PRNGKey(0)
    kx, k1, k2, k3, k4 = jax.random.split(key, 5)

    x = jax.random.normal(kx, (B, C, H, W), dtype=jnp.float32)
    w1 = jax.random.normal(k1, (Cr, C), dtype=jnp.float32) * 0.1  # Linear(C -> Cr)
    b1 = jax.random.normal(k2, (Cr,), dtype=jnp.float32) * 0.1
    w2 = jax.random.normal(k3, (C, Cr), dtype=jnp.float32) * 0.1  # Linear(Cr -> C)
    b2 = jax.random.normal(k4, (C,), dtype=jnp.float32) * 0.1

    # 1) Aligned case (HW is a multiple of the tile -> mask-free path).
    scale = jax.block_until_ready(channel_gate(x, w1, b1, w2, b2))
    ref = _reference(x, w1, b1, w2, b2)
    assert scale.shape == (B, C, 1, 1), scale.shape
    assert jnp.allclose(scale, ref, atol=1e-5, rtol=1e-5), "aligned mismatch"

    # 2) Ragged case (15x15 -> masked final sub-chunk on the last step only).
    x2 = jax.random.normal(kx, (B, C, 15, 15), dtype=jnp.float32)
    scale2 = jax.block_until_ready(channel_gate(x2, w1, b1, w2, b2))
    ref2 = _reference(x2, w1, b1, w2, b2)
    assert jnp.allclose(scale2, ref2, atol=1e-5, rtol=1e-5), "ragged mismatch"

    # 3) Native-dtype streaming: bf16 activations stay bf16 on the HBM wire and
    #    are upcast to f32 only inside the kernel.
    xb = x.astype(jnp.bfloat16)
    scale3 = jax.block_until_ready(channel_gate(xb, w1, b1, w2, b2))
    ref3 = _reference(xb, w1, b1, w2, b2)
    assert jnp.allclose(scale3, ref3, atol=1e-4, rtol=1e-4), "bf16 mismatch"

    print("KERNEL_OK")
</pallas_src>

<mosaic_0001>
module attributes {stable_mosaic.version = 11 : i64} {
  func.func @kernel(%arg0: i32, %arg1: i32, %arg2: memref<1x20x256xf32, #tpu.memory_space<vmem>>, %arg3: memref<2x20xf32, #tpu.memory_space<vmem>>, %arg4: memref<2x1xf32, #tpu.memory_space<vmem>>, %arg5: memref<20x2xf32, #tpu.memory_space<vmem>>, %arg6: memref<20x1xf32, #tpu.memory_space<vmem>>, %arg7: memref<1x20x1xf32, #tpu.memory_space<vmem>>, %arg8: memref<20x128xf32, #tpu.memory_space<vmem>>, %arg9: memref<20x128xf32, #tpu.memory_space<vmem>>) attributes {dimension_semantics = [#tpu.dimension_semantics<parallel>, #tpu.dimension_semantics<arbitrary>], iteration_bounds = array<i64: 2, 1>, scalar_prefetch = 0 : i64, scratch_operands = 2 : i64, tpu.core_type = #tpu.core_type<tc>, window_params = [{transform_indices = @transform_0, window_bounds = array<i64: 1, 20, 256>}, {pipeline_mode = #tpu.pipeline_mode<synchronous>, transform_indices = @transform_1, window_bounds = array<i64: 2, 20>}, {pipeline_mode = #tpu.pipeline_mode<synchronous>, transform_indices = @transform_2, window_bounds = array<i64: 2, 1>}, {pipeline_mode = #tpu.pipeline_mode<synchronous>, transform_indices = @transform_3, window_bounds = array<i64: 20, 2>}, {pipeline_mode = #tpu.pipeline_mode<synchronous>, transform_indices = @transform_4, window_bounds = array<i64: 20, 1>}, {transform_indices = @transform_5, window_bounds = array<i64: 1, 20, 1>}]} {
    %c0_i32 = arith.constant 0 : i32
    %0 = arith.cmpi eq, %arg1, %c0_i32 : i32
    %1 = arith.extui %0 : i1 to i32
    %c0_i32_0 = arith.constant 0 : i32
    %2 = arith.cmpi ne, %1, %c0_i32_0 : i32
    scf.if %2 {
      %cst = arith.constant 0.000000e+00 : f32
      %18 = vector.broadcast %cst : f32 to vector<20x128xf32>
      %c0_15 = arith.constant 0 : index
      %c0_16 = arith.constant 0 : index
      %19 = vector.load %arg8[%c0_15, %c0_16] : memref<20x128xf32, #tpu.memory_space<vmem>>, vector<20x128xf32>
      tpu.vector_store %arg8[%c0_15, %c0_16], %18 {strides = array<i32>} : memref<20x128xf32, #tpu.memory_space<vmem>>, vector<20x128xf32>,
      %cst_17 = arith.constant 0xFF800000 : f32
      %20 = vector.broadcast %cst_17 : f32 to vector<20x128xf32>
      %c0_18 = arith.constant 0 : index
      %c0_19 = arith.constant 0 : index
      %21 = vector.load %arg9[%c0_18, %c0_19] : memref<20x128xf32, #tpu.memory_space<vmem>>, vector<20x128xf32>
      tpu.vector_store %arg9[%c0_18, %c0_19], %20 {strides = array<i32>} : memref<20x128xf32, #tpu.memory_space<vmem>>, vector<20x128xf32>,
    } else {
    }
    %c0 = arith.constant 0 : index
    %c0_1 = arith.constant 0 : index
    %c0_2 = arith.constant 0 : index
    %3 = vector.load %arg2[%c0, %c0_1, %c0_2] : memref<1x20x256xf32, #tpu.memory_space<vmem>>, vector<1x20x128xf32>
    %4 = vector.shape_cast %3 : vector<1x20x128xf32> to vector<20x128xf32>
    %c0_3 = arith.constant 0 : index
    %c0_4 = arith.constant 0 : index
    %c128 = arith.constant 128 : index
    %5 = vector.load %arg2[%c0_3, %c0_4, %c128] : memref<1x20x256xf32, #tpu.memory_space<vmem>>, vector<1x20x128xf32>
    %6 = vector.shape_cast %5 : vector<1x20x128xf32> to vector<20x128xf32>
    %7 = arith.addf %4, %6 : vector<20x128xf32>
    %8 = arith.maximumf %4, %6 : vector<20x128xf32>
    %c0_5 = arith.constant 0 : index
    %c0_6 = arith.constant 0 : index
    %9 = vector.load %arg8[%c0_5, %c0_6] : memref<20x128xf32, #tpu.memory_space<vmem>>, vector<20x128xf32>
    %10 = arith.addf %9, %7 : vector<20x128xf32>
    %c0_7 = arith.constant 0 : index
    %c0_8 = arith.constant 0 : index
    %11 = vector.load %arg8[%c0_7, %c0_8] : memref<20x128xf32, #tpu.memory_space<vmem>>, vector<20x128xf32>
    tpu.vector_store %arg8[%c0_7, %c0_8], %10 {strides = array<i32>} : memref<20x128xf32, #tpu.memory_space<vmem>>, vector<20x128xf32>,
    %c0_9 = arith.constant 0 : index
    %c0_10 = arith.constant 0 : index
    %12 = vector.load %arg9[%c0_9, %c0_10] : memref<20x128xf32, #tpu.memory_space<vmem>>, vector<20x128xf32>
    %13 = arith.maximumf %12, %8 : vector<20x128xf32>
    %c0_11 = arith.constant 0 : index
    %c0_12 = arith.constant 0 : index
    %14 = vector.load %arg9[%c0_11, %c0_12] : memref<20x128xf32, #tpu.memory_space<vmem>>, vector<20x128xf32>
    tpu.vector_store %arg9[%c0_11, %c0_12], %13 {strides = array<i32>} : memref<20x128xf32, #tpu.memory_space<vmem>>, vector<20x128xf32>,
    %c0_i32_13 = arith.constant 0 : i32
    %15 = arith.cmpi eq, %arg1, %c0_i32_13 : i32
    %16 = arith.extui %15 : i1 to i32
    %c0_i32_14 = arith.constant 0 : i32
    %17 = arith.cmpi ne, %16, %c0_i32_14 : i32
    scf.if %17 {
      %c0_15 = arith.constant 0 : index
      %c0_16 = arith.constant 0 : index
      %18 = vector.load %arg8[%c0_15, %c0_16] : memref<20x128xf32, #tpu.memory_space<vmem>>, vector<20x128xf32>
      %cst = arith.constant dense<0.000000e+00> : vector<20xf32>
      %19 = vector.multi_reduction <add>, %18, %cst [1] : vector<20x128xf32> to vector<20xf32>
      %20 = vector.shape_cast %19 : vector<20xf32> to vector<20x1xf32>
      %cst_17 = arith.constant 3.906250e-03 : f32
      %21 = vector.broadcast %cst_17 : f32 to vector<20x1xf32>
      %22 = arith.mulf %20, %21 : vector<20x1xf32>
      %c0_18 = arith.constant 0 : index
      %c0_19 = arith.constant 0 : index
      %23 = vector.load %arg9[%c0_18, %c0_19] : memref<20x128xf32, #tpu.memory_space<vmem>>, vector<20x128xf32>
      %cst_20 = arith.constant dense<0xFF800000> : vector<20xf32>
      %24 = vector.multi_reduction <maximumf>, %23, %cst_20 [1] : vector<20x128xf32> to vector<20xf32>
      %25 = vector.shape_cast %24 : vector<20xf32> to vector<20x1xf32>
      %26 = tpu.concatenate %22, %25 in 1 : vector<20x1xf32>, vector<20x1xf32> -> vector<20x2xf32>
      %c0_21 = arith.constant 0 : index
      %c0_22 = arith.constant 0 : index
      %27 = vector.load %arg3[%c0_21, %c0_22] : memref<2x20xf32, #tpu.memory_space<vmem>>, vector<2x20xf32>
      %cst_23 = arith.constant dense<0.000000e+00> : vector<2x2xf32>
      %28 = tpu.matmul %27, %26, %cst_23 {dimension_numbers = #tpu.dot_dimension_numbers<[1], [0], [0], [1], [0, 0, 1, 1], [], []>} : vector<2x20xf32>, vector<20x2xf32>, vector<2x2xf32> -> vector<2x2xf32>
      %c0_24 = arith.constant 0 : index
      %c0_25 = arith.constant 0 : index
      %29 = vector.load %arg4[%c0_24, %c0_25] : memref<2x1xf32, #tpu.memory_space<vmem>>, vector<2x1xf32>
      %30 = vector.broadcast %29 : vector<2x1xf32> to vector<2x2xf32>
      %31 = arith.addf %28, %30 : vector<2x2xf32>
      %cst_26 = arith.constant 0.000000e+00 : f32
      %32 = vector.broadcast %cst_26 : f32 to vector<2x2xf32>
      %33 = arith.maximumf %31, %32 : vector<2x2xf32>
      %c0_27 = arith.constant 0 : index
      %c0_28 = arith.constant 0 : index
      %34 = vector.load %arg5[%c0_27, %c0_28] : memref<20x2xf32, #tpu.memory_space<vmem>>, vector<20x2xf32>
      %cst_29 = arith.constant dense<0.000000e+00> : vector<20x2xf32>
      %35 = tpu.matmul %34, %33, %cst_29 {dimension_numbers = #tpu.dot_dimension_numbers<[1], [0], [0], [1], [0, 0, 1, 1], [], []>} : vector<20x2xf32>, vector<2x2xf32>, vector<20x2xf32> -> vector<20x2xf32>
      %c0_30 = arith.constant 0 : index
      %c0_31 = arith.constant 0 : index
      %36 = vector.load %arg6[%c0_30, %c0_31] : memref<20x1xf32, #tpu.memory_space<vmem>>, vector<20x1xf32>
      %37 = vector.broadcast %36 : vector<20x1xf32> to vector<20x2xf32>
      %38 = arith.addf %35, %37 : vector<20x2xf32>
      %39 = vector.extract_strided_slice %38 {offsets = [0, 0], sizes = [20, 1], strides = [1, 1]} : vector<20x2xf32> to vector<20x1xf32>
      %40 = vector.extract_strided_slice %38 {offsets = [0, 1], sizes = [20, 1], strides = [1, 1]} : vector<20x2xf32> to vector<20x1xf32>
      %41 = arith.addf %39, %40 : vector<20x1xf32>
      %42 = arith.negf %41 : vector<20x1xf32>
      %43 = math.exp %42 : vector<20x1xf32>
      %cst_32 = arith.constant 1.000000e+00 : f32
      %44 = vector.broadcast %cst_32 : f32 to vector<20x1xf32>
      %45 = arith.addf %44, %43 : vector<20x1xf32>
      %46 = arith.divf %44, %45 : vector<20x1xf32>
      %c0_33 = arith.constant 0 : index
      %c0_34 = arith.constant 0 : index
      %c0_35 = arith.constant 0 : index
      %47 = vector.load %arg7[%c0_33, %c0_34, %c0_35] : memref<1x20x1xf32, #tpu.memory_space<vmem>>, vector<1x20x1xf32>
      %48 = vector.shape_cast %47 : vector<1x20x1xf32> to vector<20x1xf32>
      %49 = vector.shape_cast %46 : vector<20x1xf32> to vector<1x20x1xf32>
      tpu.vector_store %arg7[%c0_33, %c0_34, %c0_35], %49 {strides = array<i32>} : memref<1x20x1xf32, #tpu.memory_space<vmem>>, vector<1x20x1xf32>,
    } else {
    }
    return
  }
  func.func @transform_0(%arg0: i32, %arg1: i32) -> (i32, i32, i32) {
    %c0_i32 = arith.constant 0 : i32
    %c0_i32_0 = arith.constant 0 : i32
    return %arg0, %c0_i32, %arg1 : i32, i32, i32
  }
  func.func @transform_1(%arg0: i32, %arg1: i32) -> (i32, i32) {
    %c0_i32 = arith.constant 0 : i32
    %c0_i32_0 = arith.constant 0 : i32
    %c0_i32_1 = arith.constant 0 : i32
    return %c0_i32, %c0_i32_0 : i32, i32
  }
  func.func @transform_2(%arg0: i32, %arg1: i32) -> (i32, i32) {
    %c0_i32 = arith.constant 0 : i32
    %c0_i32_0 = arith.constant 0 : i32
    %c0_i32_1 = arith.constant 0 : i32
    return %c0_i32, %c0_i32_0 : i32, i32
  }
  func.func @transform_3(%arg0: i32, %arg1: i32) -> (i32, i32) {
    %c0_i32 = arith.constant 0 : i32
    %c0_i32_0 = arith.constant 0 : i32
    %c0_i32_1 = arith.constant 0 : i32
    return %c0_i32, %c0_i32_0 : i32, i32
  }
  func.func @transform_4(%arg0: i32, %arg1: i32) -> (i32, i32) {
    %c0_i32 = arith.constant 0 : i32
    %c0_i32_0 = arith.constant 0 : i32
    %c0_i32_1 = arith.constant 0 : i32
    return %c0_i32, %c0_i32_0 : i32, i32
  }
  func.func @transform_5(%arg0: i32, %arg1: i32) -> (i32, i32, i32) {
    %c0_i32 = arith.constant 0 : i32
    %c0_i32_0 = arith.constant 0 : i32
    %c0_i32_1 = arith.constant 0 : i32
    return %arg0, %c0_i32, %c0_i32_0 : i32, i32, i32
  }
}

</mosaic_0001>

<llo_original>
// kernel: tpu_custom_call.1
$region0: #{tpu_custom_call.1}
  #allocation0 [shape = 'u32[]', space=smem, size = 0x4, offset = 0x4, fixed_abs, tag = 'smem constant byte address 0x4 - core index']
  #allocation1 [shape = 'u32[144,128]{1,0:T(1,128)}', space=vmem, size = 0x12000, scoped, tag = 'internal scratch']
  #allocation2 [shape = 'f32[20,128]{1,0:T(8,128)}', space=vmem, size = 0x3000, scoped, tag = 'scratch operand']
  #allocation3 [shape = 'f32[20,128]{1,0:T(8,128)}', space=vmem, size = 0x3000, scoped, tag = 'scratch operand']
  %s0 = inlined_call_operand.vmem [shape: f32[2,20,256], index: 0, kind: input, shape index: {}]
  %s1 = inlined_call_operand.vmem [shape: f32[2,20], index: 1, kind: input, shape index: {}]
  %s2 = inlined_call_operand.vmem [shape: f32[2,1], index: 2, kind: input, shape index: {}]
  %s3 = inlined_call_operand.vmem [shape: f32[20,2], index: 3, kind: input, shape index: {}]
  %s4 = inlined_call_operand.vmem [shape: f32[20,1], index: 4, kind: input, shape index: {}]
  %s5 = inlined_call_operand.vmem [shape: f32[2,20,1], index: 5, kind: output, shape index: {}]
  %s6 = sld [smem:[#allocation0]]
  $region61: #{tpu_custom_call.1} parent=0
    _
  %s8 = ssub.s32 1, %s6
  %s9 = scalar_select 0, %s8, %s6
  loop: start=0, step=1, limit=4
  $region2: #{tpu_custom_call.1} parent=0 // loop_pre_header
    _
  $region3: #{tpu_custom_call.1} parent=0 // loop_header
    %s11 = sphi 0, %s15
    %p12 = scmp.ge.s32.totalorder %s11, 4
    %s18 = sphi 0, %s30
    %s19 = sphi 0, %s26
    %s20 = sphi 0, %s18
    %s21 = sphi 0, %s19
    %s22 = sphi 0, %s20
    %s23 = sphi 0, %s21
    %s35 = sphi 0, %s37
    %s38 = sphi 0, %s35
    %s39 = sphi 0, %s38
    %s55 = sphi 0, %s39
    %s59 = sphi 0, %s59
    %s61 = sphi 0, %s59
    %s62 = sphi 0, %s61
    %s76 = sphi 0, %s62
    %s80 = sphi 0, %s80
    %s82 = sphi 0, %s80
    %s83 = sphi 0, %s82
    %s97 = sphi 0, %s83
    %s101 = sphi 0, %s101
    %s103 = sphi 0, %s101
    %s104 = sphi 0, %s103
    %s118 = sphi 0, %s104
    %s122 = sphi 0, %s122
    %s124 = sphi 0, %s122
    %s125 = sphi 0, %s124
    %s139 = sphi 0, %s125
    %s145 = sphi 0, %s147
    %s148 = sphi 0, %s145
    %s149 = sphi 0, %s148
    %s165 = sphi 0, %s149
  $region4: #{tpu_custom_call.1} parent=0 // loop_header_branch
    %14 = sbr.rel (%p12) target = $region8
  $region5: #{tpu_custom_call.1} parent=0 // loop_body
    %s16 = ssub.s32 %s11, 1
    %s17 = ssub.s32 %s11, 2
    %s24 = sadd.s32 1, %s19
    %p25 = scmp.ge.s32.totalorder %s24, 1
    %s26 = scalar_select %p25, 0, %s24
    %s27 = sadd.s32 1, %s18
    %s28 = scalar_select %p25, %s27, %s18
    %p29 = scmp.ge.s32.totalorder %s28, 2
    %s30 = scalar_select %p29, 0, %s28
    %s31 = ssub.s32 %s18, %s30
    %s32 = ssub.s32 %s19, %s26
    %s33 = sor.u32 %s31, %s32
    %p34 = scmp.eq.s32.totalorder %s33, 0
    %s36 = sadd.s32 %s35, 1
    %s37 = scalar_select %p34, %s35, %s36
    %p40 = pneg %p34
    %p41 = scmp.eq.s32.totalorder %s11, 1
    %p42 = por %p40, %p41
    %p43 = scmp.ne.s32.totalorder %s35, %s38
    %p44 = scmp.eq.s32.totalorder %s11, 0
    %p45 = por %p43, %p44
    %p46 = scmp.ne.s32.totalorder %s35, %s38
    %p47 = scmp.eq.s32.totalorder %s16, 1
    %p48 = por %p46, %p47
    %p49 = scmp.ne.s32.totalorder %s38, %s39
    %p50 = scmp.eq.s32.totalorder %s16, 0
    %p51 = por %p49, %p50
    %p52 = scmp.ne.s32.totalorder %s38, %s39
    %p53 = scmp.eq.s32.totalorder %s17, 1
    %p54 = por %p52, %p53
    %p56 = scmp.ne.s32.totalorder %s39, %s55
    %p57 = scmp.eq.s32.totalorder %s17, 0
    %p58 = por %p56, %p57
    %s60 = sadd.s32 %s59, 1
    %p63 = scmp.eq.s32.totalorder %s11, 1
    %p64 = scmp.ne.s32.totalorder %s59, %s61
    %p65 = scmp.eq.s32.totalorder %s11, 0
    %p66 = por %p64, %p65
    %p67 = scmp.ne.s32.totalorder %s59, %s61
    %p68 = scmp.eq.s32.totalorder %s16, 1
    %p69 = por %p67, %p68
    %p70 = scmp.ne.s32.totalorder %s61, %s62
    %p71 = scmp.eq.s32.totalorder %s16, 0
    %p72 = por %p70, %p71
    %p73 = scmp.ne.s32.totalorder %s61, %s62
    %p74 = scmp.eq.s32.totalorder %s17, 1
    %p75 = por %p73, %p74
    %p77 = scmp.ne.s32.totalorder %s62, %s76
    %p78 = scmp.eq.s32.totalorder %s17, 0
    %p79 = por %p77, %p78
    %s81 = sadd.s32 %s80, 1
    %p84 = scmp.eq.s32.totalorder %s11, 1
    %p85 = scmp.ne.s32.totalorder %s80, %s82
    %p86 = scmp.eq.s32.totalorder %s11, 0
    %p87 = por %p85, %p86
    %p88 = scmp.ne.s32.totalorder %s80, %s82
    %p89 = scmp.eq.s32.totalorder %s16, 1
    %p90 = por %p88, %p89
    %p91 = scmp.ne.s32.totalorder %s82, %s83
    %p92 = scmp.eq.s32.totalorder %s16, 0
    %p93 = por %p91, %p92
    %p94 = scmp.ne.s32.totalorder %s82, %s83
    %p95 = scmp.eq.s32.totalorder %s17, 1
    %p96 = por %p94, %p95
    %p98 = scmp.ne.s32.totalorder %s83, %s97
    %p99 = scmp.eq.s32.totalorder %s17, 0
    %p100 = por %p98, %p99
    %s102 = sadd.s32 %s101, 1
    %p105 = scmp.eq.s32.totalorder %s11, 1
    %p106 = scmp.ne.s32.totalorder %s101, %s103
    %p107 = scmp.eq.s32.totalorder %s11, 0
    %p108 = por %p106, %p107
    %p109 = scmp.ne.s32.totalorder %s101, %s103
    %p110 = scmp.eq.s32.totalorder %s16, 1
    %p111 = por %p109, %p110
    %p112 = scmp.ne.s32.totalorder %s103, %s104
    %p113 = scmp.eq.s32.totalorder %s16, 0
    %p114 = por %p112, %p113
    %p115 = scmp.ne.s32.totalorder %s103, %s104
    %p116 = scmp.eq.s32.totalorder %s17, 1
    %p117 = por %p115, %p116
    %p119 = scmp.ne.s32.totalorder %s104, %s118
    %p120 = scmp.eq.s32.totalorder %s17, 0
    %p121 = por %p119, %p120
    %s123 = sadd.s32 %s122, 1
    %p126 = scmp.eq.s32.totalorder %s11, 1
    %p127 = scmp.ne.s32.totalorder %s122, %s124
    %p128 = scmp.eq.s32.totalorder %s11, 0
    %p129 = por %p127, %p128
    %p130 = scmp.ne.s32.totalorder %s122, %s124
    %p131 = scmp.eq.s32.totalorder %s16, 1
    %p132 = por %p130, %p131
    %p133 = scmp.ne.s32.totalorder %s124, %s125
    %p134 = scmp.eq.s32.totalorder %s16, 0
    %p135 = por %p133, %p134
    %p136 = scmp.ne.s32.totalorder %s124, %s125
    %p137 = scmp.eq.s32.totalorder %s17, 1
    %p138 = por %p136, %p137
    %p140 = scmp.ne.s32.totalorder %s125, %s139
    %p141 = scmp.eq.s32.totalorder %s17, 0
    %p142 = por %p140, %p141
    %s143 = ssub.s32 %s18, %s30
    %p144 = scmp.eq.s32.totalorder %s143, 0
    %s146 = sadd.s32 %s145, 1
    %s147 = scalar_select %p144, %s145, %s146
    %p150 = pneg %p144
    %p151 = scmp.eq.s32.totalorder %s11, 1
    %p152 = por %p150, %p151
    %p153 = scmp.ne.s32.totalorder %s145, %s148
    %p154 = scmp.eq.s32.totalorder %s11, 0
    %p155 = por %p153, %p154
    %p156 = scmp.ne.s32.totalorder %s145, %s148
    %p157 = scmp.eq.s32.totalorder %s16, 1
    %p158 = por %p156, %p157
    %p159 = scmp.ne.s32.totalorder %s148, %s149
    %p160 = scmp.eq.s32.totalorder %s16, 0
    %p161 = por %p159, %p160
    %p162 = scmp.ne.s32.totalorder %s148, %s149
    %p163 = scmp.eq.s32.totalorder %s17, 1
    %p164 = por %p162, %p163
    %p166 = scmp.ne.s32.totalorder %s149, %s165
    %p167 = scmp.eq.s32.totalorder %s17, 0
    %p168 = por %p166, %p167
    %p169 = scmp.le.s32.totalorder 1, %s11
    %p170 = scmp.lt.s32.totalorder %s11, 3
    %p171 = pnand %p169, %p170
    %p172 = pneg %p171
    // Predicated region
    $region9: #{tpu_custom_call.1} parent=5 // pred_check
      _
    $region10: #{tpu_custom_call.1} parent=5 // pred_check_branch
      %174 = sbr.rel (%p171) target = $region12
    $region11: #{tpu_custom_call.1} parent=5 // pred_region
      %s175 = ssub.s32 %s11, 1
      // Predicated region
      $region13: #{tpu_custom_call.1} parent=11 // pred_check
        %p176 = pneg %p72
      $region14: #{tpu_custom_call.1} parent=11 // pred_check_branch
        %178 = sbr.rel (%p176) target = $region16
      $region15: #{tpu_custom_call.1} parent=11 // pred_region
        _
      $region16: #{tpu_custom_call.1} parent=11 // pred_fallthru
        _
      // Predicated region
      $region17: #{tpu_custom_call.1} parent=11 // pred_check
        %p179 = pneg %p93
      $region18: #{tpu_custom_call.1} parent=11 // pred_check_branch
        %181 = sbr.rel (%p179) target = $region20
      $region19: #{tpu_custom_call.1} parent=11 // pred_region
        _
      $region20: #{tpu_custom_call.1} parent=11 // pred_fallthru
        _
      // Predicated region
      $region21: #{tpu_custom_call.1} parent=11 // pred_check
        %p182 = pneg %p114
      $region22: #{tpu_custom_call.1} parent=11 // pred_check_branch
        %184 = sbr.rel (%p182) target = $region24
      $region23: #{tpu_custom_call.1} parent=11 // pred_region
        _
      $region24: #{tpu_custom_call.1} parent=11 // pred_fallthru
        _
      // Predicated region
      $region25: #{tpu_custom_call.1} parent=11 // pred_check
        %p185 = pneg %p135
      $region26: #{tpu_custom_call.1} parent=11 // pred_check_branch
        %187 = sbr.rel (%p185) target = $region28
      $region27: #{tpu_custom_call.1} parent=11 // pred_region
        _
      $region28: #{tpu_custom_call.1} parent=11 // pred_fallthru
        _
    $region12: #{tpu_custom_call.1} parent=5 // pred_fallthru
      _
    %p188 = scmp.lt.s32.totalorder %s11, 2
    // Predicated region
    $region29: #{tpu_custom_call.1} parent=5 // pred_check
      %p189 = pneg %p188
    $region30: #{tpu_custom_call.1} parent=5 // pred_check_branch
      %191 = sbr.rel (%p189) target = $region32
    $region31: #{tpu_custom_call.1} parent=5 // pred_region
      // Predicated region
      $region33: #{tpu_custom_call.1} parent=31 // pred_check
        %p192 = pneg %p45
      $region34: #{tpu_custom_call.1} parent=31 // pred_check_branch
        %194 = sbr.rel (%p192) target = $region36
      $region35: #{tpu_custom_call.1} parent=31 // pred_region
        %s195 = smul.u32 2, %s19
        %p196 = scmp.lt.s32.totalorder %s18, 1
        %s197 = scalar_select %p196, %s18, 1
        %p198 = scmp.lt.s32.totalorder %s195, 1
        %s199 = scalar_select %p198, %s195, 1
        %s200 = smul.addr %s197, 6
        %s201 = sadd.s32 %s199, %s200
        %s202 = smul.addr %s201, 8
        %s203 = scalar_lea.vmem %s0, %s202
        %s204 = smul.u32 2, %s19
      $region36: #{tpu_custom_call.1} parent=31 // pred_fallthru
        _
    $region32: #{tpu_custom_call.1} parent=5 // pred_fallthru
      _
    %p205 = scmp.le.s32.totalorder 1, %s11
    %p206 = scmp.lt.s32.totalorder %s11, 3
    %p207 = pnand %p205, %p206
    %p208 = pneg %p207
    // Predicated region
    $region37: #{tpu_custom_call.1} parent=5 // pred_check
      _
    $region38: #{tpu_custom_call.1} parent=5 // pred_check_branch
      %210 = sbr.rel (%p207) target = $region40
    $region39: #{tpu_custom_call.1} parent=5 // pred_region
      %s211 = ssub.s32 %s11, 1
      %s212 = smul.u32 2, %s21
      %p213 = scmp.lt.s32.totalorder %s20, 1
      %s214 = scalar_select %p213, %s20, 1
      %p215 = scmp.lt.s32.totalorder %s212, 1
      %s216 = scalar_select %p215, %s212, 1
      %s217 = smul.addr %s214, 6
      %s218 = sadd.s32 %s216, %s217
      %s219 = smul.addr %s218, 8
      %s220 = scalar_lea.vmem %s0, %s219
      %p221 = pneg %p51
      %p222 = pneg %p48
      %p223 = pneg %p72
      %p224 = pneg %p69
      %p225 = pneg %p93
      %p226 = pneg %p90
      %p227 = pneg %p114
      %p228 = pneg %p111
      %p229 = pneg %p135
      %p230 = pneg %p132
      %p231 = pneg %p161
      %p232 = pneg %p158
      %p233 = scmp.lt.s32.totalorder %s20, 1
      %s234 = scalar_select %p233, %s20, 1
      %s235 = smul.addr %s234, 3
      %s236 = smul.addr %s235, 8
      %s237 = scalar_lea.vmem %s5, %s236
      %s238 = smul.u32 2, %s21
      %p239 = scmp.lt.s32.totalorder %s20, 1
      %s240 = scalar_select %p239, %s20, 1
      %p241 = scmp.lt.s32.totalorder %s238, 1
      %s242 = scalar_select %p241, %s238, 1
      %s243 = smul.addr %s240, 6
      %s244 = sadd.s32 %s242, %s243
      %s245 = smul.addr %s244, 8
      %s246 = scalar_lea.vmem %s0, %s245
      %s247 = smul.u32 2, %s21
      %p248 = scmp.lt.s32.totalorder %s20, 1
      %s249 = scalar_select %p248, %s20, 1
      %s250 = smul.addr %s249, 3
      %s251 = smul.addr %s250, 8
      %s252 = scalar_lea.vmem %s5, %s251
      %p253 = scmp.eq.s32.totalorder %s21, 0
      // Predicated region
      $region41: #{tpu_custom_call.1} parent=39 // pred_check
        %p254 = pneg %p253
      $region42: #{tpu_custom_call.1} parent=39 // pred_check_branch
        %256 = sbr.rel (%p254) target = $region44
      $region43: #{tpu_custom_call.1} parent=39 // pred_region
        %257 = vst [vmem:[#allocation2] sm:$0xff] 0.0
        %258 = vst [vmem:[#allocation2 + $0x8] sm:$0xff] 0.0
        %259 = vst [vmem:[#allocation2 + $0x10] sm:$0xf] 0.0
        %260 = vst [vmem:[#allocation3] sm:$0xff] -inf
        %261 = vst [vmem:[#allocation3 + $0x8] sm:$0xff] -inf
        %262 = vst [vmem:[#allocation3 + $0x10] sm:$0xf] -inf
      $region44: #{tpu_custom_call.1} parent=39 // pred_fallthru
        _
      %v263 = vld [vmem:[%s246] sm:$0xff]
      %v264 = vld [vmem:[%s246 + $0x10] sm:$0xff]
      %v265 = vld [vmem:[%s246 + $0x20] sm:$0xf]
      %v266 = vld [vmem:[%s246 + $0x8] sm:$0xff]
      %v267 = vld [vmem:[%s246 + $0x18] sm:$0xff]
      %v268 = vld [vmem:[%s246 + $0x28] sm:$0xf]
      %v269 = vadd.f32 %v263, %v266
      %v270 = vadd.f32 %v264, %v267
      %v271 = vadd.f32 %v265, %v268
      %v272 = vmax.f32 %v263, %v266
      %v273 = vmax.f32 %v264, %v267
      %v274 = vmax.f32 %v265, %v268
      %v275 = vld [vmem:[#allocation2] sm:$0xff]
      %v276 = vld [vmem:[#allocation2 + $0x8] sm:$0xff]
      %v277 = vld [vmem:[#allocation2 + $0x10] sm:$0xf]
      %v278 = vadd.f32 %v275, %v269
      %v279 = vadd.f32 %v276, %v270
      %v280 = vadd.f32 %v277, %v271
      %281 = vst [vmem:[#allocation2] sm:$0xff] %v278
      %282 = vst [vmem:[#allocation2 + $0x8] sm:$0xff] %v279
      %283 = vst [vmem:[#allocation2 + $0x10] sm:$0xf] %v280
      %v284 = vld [vmem:[#allocation3] sm:$0xff]
      %v285 = vld [vmem:[#allocation3 + $0x8] sm:$0xff]
      %v286 = vld [vmem:[#allocation3 + $0x10] sm:$0xf]
      %v287 = vmax.f32 %v284, %v272
      %v288 = vmax.f32 %v285, %v273
      %v289 = vmax.f32 %v286, %v274
      %290 = vst [vmem:[#allocation3] sm:$0xff] %v287
      %291 = vst [vmem:[#allocation3 + $0x8] sm:$0xff] %v288
      %292 = vst [vmem:[#allocation3 + $0x10] sm:$0xf] %v289
      // Predicated region
      $region45: #{tpu_custom_call.1} parent=39 // pred_check
        %p293 = pneg %p253
      $region46: #{tpu_custom_call.1} parent=39 // pred_check_branch
        %295 = sbr.rel (%p293) target = $region48
      $region47: #{tpu_custom_call.1} parent=39 // pred_region
        %v296 = vld [vmem:[#allocation2] sm:$0xff]
        %v297 = vld [vmem:[#allocation2 + $0x8] sm:$0xff]
        %v298 = vld [vmem:[#allocation2 + $0x10] sm:$0xf]
        %299 = vadd.xlane.f32.xlu0 %v296
        %v300 = vpop.xlane.xlu0 %299
        %301 = vadd.xlane.f32.xlu0 %v297
        %v302 = vpop.xlane.xlu0 %301
        %vm303 = vcmask 1043456
        %v304 = vsel %vm303, %v298, 0.0
        %305 = vadd.xlane.f32.xlu0 %v304
        %v306 = vpop.xlane.xlu0 %305
        %v307 = vmul.f32 %v300, 0.00390625
        %v308 = vmul.f32 %v302, 0.00390625
        %v309 = vmul.f32 %v306, 0.00390625
        %v310 = vld [vmem:[#allocation3] sm:$0xff]
        %v311 = vld [vmem:[#allocation3 + $0x8] sm:$0xff]
        %v312 = vld [vmem:[#allocation3 + $0x10] sm:$0xf]
        %313 = vmax.xlane.f32.xlu0 %v310
        %v314 = vpop.xlane.xlu0 %313
        %315 = vmax.xlane.f32.xlu0 %v311
        %v316 = vpop.xlane.xlu0 %315
        %v317 = vsel %vm303, %v312, -inf
        %318 = vmax.xlane.f32.xlu0 %v317
        %v319 = vpop.xlane.xlu0 %318
        %vm320 = vcmask 7168
        %v321 = vsel %vm320, %v307, %v314
        %v322 = vsel %vm320, %v308, %v316
        %v323 = vsel %vm320, %v309, %v319
        %v324 = vld [vmem:[%s1] sm:$0x3]
        %v325 = vld [vmem:[%s2] sm:$0x3]
        %327 = vset.pattern.permute.xlu0 0
        %328 = vperm.xlu0 %327, %v325
        %v329 = vpop.permute.xlu0 %328
        %vm331 = vcmask 162816
        %v333 = vsel %vm331, %v324, 0
        %v336 = vsel %vm303, %v323, 0
        %338 = vmatprep.subr.mxu0 0.0
        %339 = vmatpush1.msra.mxu0 0.0
        %340 = vmatprep.subr.mxu0 0.0
        %341 = vmatpush1.msra.mxu0 0.0
        %342 = vmatprep.subr.mxu0 0.0
        %343 = vmatpush1.msra.mxu0 0.0
        %344 = vmatprep.subr.mxu0 0.0
        %345 = vmatpush1.msra.mxu0 0.0
        %346 = vmatprep.subr.mxu0 0.0
        %347 = vmatpush1.msra.mxu0 0.0
        %348 = vmatprep.subr.mxu0 0.0
        %349 = vmatpush1.msra.mxu0 0.0
        %350 = vmatprep.subr.mxu0 0.0
        %351 = vmatpush1.msra.mxu0 0.0
        %352 = vmatprep.subr.mxu0 0.0
        %353 = vmatpush1.msra.mxu0 0.0
        %354 = vmatprep.subr.mxu0 0.0
        %355 = vmatpush1.msra.mxu0 0.0
        %356 = vmatprep.subr.mxu0 0.0
        %357 = vmatpush1.msra.mxu0 0.0
        %358 = vmatprep.subr.mxu0 0.0
        %359 = vmatpush1.msra.mxu0 0.0
        %360 = vmatprep.subr.mxu0 0.0
        %361 = vmatpush1.msra.mxu0 0.0
        %362 = vmatprep.subr.mxu0 0.0
        %363 = vmatpush1.msra.mxu0 0.0
        %364 = vmatprep.subr.mxu0 0.0
        %365 = vmatpush1.msra.mxu0 %v336
        %366 = vmatprep.subr.mxu0 0.0
        %367 = vmatpush1.msra.mxu0 %v322
        %368 = vmatprep.subr.mxu0 0.0
        %369 = vmatpush1.msra.mxu0 %v321
        %370 = vmatprep.subr.mxu0 0.0
        %371 = vmatpush2.msra.mxu0 0.0
        %372 = vmatprep.subr.mxu0 0.0
        %373 = vmatpush2.msra.mxu0 0.0
        %374 = vmatprep.subr.mxu0 0.0
        %375 = vmatpush2.msra.mxu0 0.0
        %376 = vmatprep.subr.mxu0 0.0
        %377 = vmatpush2.msra.mxu0 0.0
        %378 = vmatprep.subr.mxu0 0.0
        %379 = vmatpush2.msra.mxu0 0.0
        %380 = vmatprep.subr.mxu0 0.0
        %381 = vmatpush2.msra.mxu0 0.0
        %382 = vmatprep.subr.mxu0 0.0
        %383 = vmatpush2.msra.mxu0 0.0
        %384 = vmatprep.subr.mxu0 0.0
        %385 = vmatpush2.msra.mxu0 0.0
        %386 = vmatprep.subr.mxu0 0.0
        %387 = vmatpush2.msra.mxu0 0.0
        %388 = vmatprep.subr.mxu0 0.0
        %389 = vmatpush2.msra.mxu0 0.0
        %390 = vmatprep.subr.mxu0 0.0
        %391 = vmatpush2.msra.mxu0 0.0
        %392 = vmatprep.subr.mxu0 0.0
        %393 = vmatpush2.msra.mxu0 0.0
        %394 = vmatprep.subr.mxu0 0.0
        %395 = vmatpush2.msra.mxu0 0.0
        %396 = vmatprep.subr.mxu0 0.0
        %397 = vmatpush2.msra.mxu0 0.0
        %398 = vmatprep.subr.mxu0 0.0
        %399 = vmatpush2.msra.mxu0 0.0
        %400 = vmatprep.subr.mxu0 0.0
        %401 = vmatpush2.msra.mxu0 0.0
        %402 = vmatprep.mubr.f32.mxu0 0.0
        %403 = vmatmul.mubr.f32.gmra.mxu0 %v333
        %v404 = vpop.f32.mrf.mxu0
        %v405 = vadd.f32 %v329, %v404
        %v406 = vpop.f32.mrf.mxu0
        %407 = vdwg.mxu0
        %v408 = vmax.f32 %v405, 0.0
        %v409 = vld [vmem:[%s3] sm:$0xff]
        %v410 = vld [vmem:[%s3 + $0x8] sm:$0xff]
        %v411 = vld [vmem:[%s3 + $0x10] sm:$0xf]
        %v412 = vld [vmem:[%s4] sm:$0xff]
        %v413 = vld [vmem:[%s4 + $0x8] sm:$0xff]
        %v414 = vld [vmem:[%s4 + $0x10] sm:$0xf]
        %416 = vset.pattern.permute.xlu0 0
        %417 = vperm.xlu0 %416, %v412
        %v418 = vpop.permute.xlu0 %417
        %421 = vset.pattern.permute.xlu0 0
        %422 = vperm.xlu0 %421, %v413
        %v423 = vpop.permute.xlu0 %422
        %426 = vset.pattern.permute.xlu0 0
        %427 = vperm.xlu0 %426, %v414
        %v428 = vpop.permute.xlu0 %427
        %vm430 = vcmask 15360
        %v432 = vsel %vm430, %v409, 0
        %v435 = vsel %vm430, %v410, 0
        %v438 = vsel %vm430, %v411, 0
        %vm440 = vcmask 1041408
        %v442 = vsel %vm440, %v408, 0
        %444 = vmatprep.subr.mxu0 0.0
        %445 = vmatpush1.msra.mxu0 0.0
        %446 = vmatprep.subr.mxu0 0.0
        %447 = vmatpush1.msra.mxu0 0.0
        %448 = vmatprep.subr.mxu0 0.0
        %449 = vmatpush1.msra.mxu0 0.0
        %450 = vmatprep.subr.mxu0 0.0
        %451 = vmatpush1.msra.mxu0 0.0
        %452 = vmatprep.subr.mxu0 0.0
        %453 = vmatpush1.msra.mxu0 0.0
        %454 = vmatprep.subr.mxu0 0.0
        %455 = vmatpush1.msra.mxu0 0.0
        %456 = vmatprep.subr.mxu0 0.0
        %457 = vmatpush1.msra.mxu0 0.0
        %458 = vmatprep.subr.mxu0 0.0
        %459 = vmatpush1.msra.mxu0 0.0
        %460 = vmatprep.subr.mxu0 0.0
        %461 = vmatpush1.msra.mxu0 0.0
        %462 = vmatprep.subr.mxu0 0.0
        %463 = vmatpush1.msra.mxu0 0.0
        %464 = vmatprep.subr.mxu0 0.0
        %465 = vmatpush1.msra.mxu0 0.0
        %466 = vmatprep.subr.mxu0 0.0
        %467 = vmatpush1.msra.mxu0 0.0
        %468 = vmatprep.subr.mxu0 0.0
        %469 = vmatpush1.msra.mxu0 0.0
        %470 = vmatprep.subr.mxu0 0.0
        %471 = vmatpush1.msra.mxu0 0.0
        %472 = vmatprep.subr.mxu0 0.0
        %473 = vmatpush1.msra.mxu0 0.0
        %474 = vmatprep.subr.mxu0 0.0
        %475 = vmatpush1.msra.mxu0 %v442
        %476 = vmatprep.subr.mxu0 0.0
        %477 = vmatpush2.msra.mxu0 0.0
        %478 = vmatprep.subr.mxu0 0.0
        %479 = vmatpush2.msra.mxu0 0.0
        %480 = vmatprep.subr.mxu0 0.0
        %481 = vmatpush2.msra.mxu0 0.0
        %482 = vmatprep.subr.mxu0 0.0
        %483 = vmatpush2.msra.mxu0 0.0
        %484 = vmatprep.subr.mxu0 0.0
        %485 = vmatpush2.msra.mxu0 0.0
        %486 = vmatprep.subr.mxu0 0.0
        %487 = vmatpush2.msra.mxu0 0.0
        %488 = vmatprep.subr.mxu0 0.0
        %489 = vmatpush2.msra.mxu0 0.0
        %490 = vmatprep.subr.mxu0 0.0
        %491 = vmatpush2.msra.mxu0 0.0
        %492 = vmatprep.subr.mxu0 0.0
        %493 = vmatpush2.msra.mxu0 0.0
        %494 = vmatprep.subr.mxu0 0.0
        %495 = vmatpush2.msra.mxu0 0.0
        %496 = vmatprep.subr.mxu0 0.0
        %497 = vmatpush2.msra.mxu0 0.0
        %498 = vmatprep.subr.mxu0 0.0
        %499 = vmatpush2.msra.mxu0 0.0
        %500 = vmatprep.subr.mxu0 0.0
        %501 = vmatpush2.msra.mxu0 0.0
        %502 = vmatprep.subr.mxu0 0.0
        %503 = vmatpush2.msra.mxu0 0.0
        %504 = vmatprep.subr.mxu0 0.0
        %505 = vmatpush2.msra.mxu0 0.0
        %506 = vmatprep.subr.mxu0 0.0
        %507 = vmatpush2.msra.mxu0 0.0
        %508 = vmatprep.mubr.f32.mxu0 0.0
        %509 = vmatmul.mubr.f32.gmra.mxu0 %v432
        %v510 = vpop.f32.mrf.mxu0
        %v511 = vadd.f32 %v418, %v510
        %v512 = vpop.f32.mrf.mxu0
        %513 = vmatprep.mubr.f32.mxu0 0.0
        %514 = vmatmul.mubr.f32.gmra.mxu0 %v435
        %v515 = vpop.f32.mrf.mxu0
        %v516 = vadd.f32 %v423, %v515
        %v517 = vpop.f32.mrf.mxu0
        %518 = vmatprep.mubr.f32.mxu0 0.0
        %519 = vmatmul.mubr.f32.gmra.mxu0 %v438
        %v520 = vpop.f32.mrf.mxu0
        %v521 = vadd.f32 %v428, %v520
        %v522 = vpop.f32.mrf.mxu0
        %523 = vdwg.mxu0
        %527 = vrot.lane.b32.xlu0 %v511, 127
        %v528 = vpop.permute.xlu0 %527
        %529 = vrot.lane.b32.xlu0 %v516, 127
        %v530 = vpop.permute.xlu0 %529
        %531 = vrot.lane.b32.xlu0 %v521, 127
        %v532 = vpop.permute.xlu0 %531
        %v536 = vadd.f32 %v511, %v528
        %v537 = vadd.f32 %v516, %v530
        %v538 = vadd.f32 %v521, %v532
        %v539 = vxor.u32 %v536, 2147483648
        %v540 = vxor.u32 %v537, 2147483648
        %v541 = vxor.u32 %v538, 2147483648
        %v542 = vmul.f32 %v539, 1.442695
        %v543 = vpow.pop %v542
        %v544 = vmul.f32 %v540, 1.442695
        %v545 = vpow.pop %v544
        %v546 = vmul.f32 %v541, 1.442695
        %v547 = vpow.pop %v546
        %v548 = vadd.f32 %v543, 1.0
        %v549 = vadd.f32 %v545, 1.0
        %v550 = vadd.f32 %v547, 1.0
        %v551 = vrcp.pop %v548
        %v552 = vmul.f32 1.0, %v551
        %v553 = vrcp.pop %v549
        %v554 = vmul.f32 1.0, %v553
        %v555 = vrcp.pop %v550
        %v556 = vmul.f32 1.0, %v555
        %557 = vst.msk [vmem:[%s252] sm:$0xff] %vm320, %v552
        %558 = vst.msk [vmem:[%s252 + $0x8] sm:$0xff] %vm320, %v554
        %vm559 = vcmask 3072
        %560 = vst.msk [vmem:[%s252 + $0x10] sm:$0xf] %vm559, %v556
      $region48: #{tpu_custom_call.1} parent=39 // pred_fallthru
        _
      %p561 = scmp.lt.s32.totalorder %s20, 1
      %s562 = scalar_select %p561, %s20, 1
      %s563 = smul.addr %s562, 3
      %s564 = smul.addr %s563, 8
      %s565 = scalar_lea.vmem %s5, %s564
      // Predicated region
      $region49: #{tpu_custom_call.1} parent=39 // pred_check
        %p566 = pneg %p158
      $region50: #{tpu_custom_call.1} parent=39 // pred_check_branch
        %568 = sbr.rel (%p566) target = $region52
      $region51: #{tpu_custom_call.1} parent=39 // pred_region
        _
      $region52: #{tpu_custom_call.1} parent=39 // pred_fallthru
        _
    $region40: #{tpu_custom_call.1} parent=5 // pred_fallthru
      _
    %p569 = scmp.le.s32.totalorder 2, %s11
    // Predicated region
    $region53: #{tpu_custom_call.1} parent=5 // pred_check
      %p570 = pneg %p569
    $region54: #{tpu_custom_call.1} parent=5 // pred_check_branch
      %572 = sbr.rel (%p570) target = $region56
    $region55: #{tpu_custom_call.1} parent=5 // pred_region
      %s573 = ssub.s32 %s11, 2
      // Predicated region
      $region57: #{tpu_custom_call.1} parent=55 // pred_check
        %p574 = pneg %p164
      $region58: #{tpu_custom_call.1} parent=55 // pred_check_branch
        %576 = sbr.rel (%p574) target = $region60
      $region59: #{tpu_custom_call.1} parent=55 // pred_region
        %p577 = scmp.lt.s32.totalorder %s22, 1
        %s578 = scalar_select %p577, %s22, 1
        %s579 = smul.addr %s578, 3
        %s580 = smul.addr %s579, 8
        %s581 = scalar_lea.vmem %s5, %s580
      $region60: #{tpu_custom_call.1} parent=55 // pred_fallthru
        _
    $region56: #{tpu_custom_call.1} parent=5 // pred_fallthru
      _
  $region6: #{tpu_custom_call.1} parent=0 // loop_footer
    %s15 = sadd.s32 1, %s11
  $region7: #{tpu_custom_call.1} parent=0 // loop_footer_branch
    %10 = sbr.rel target = $region3
  $region8: #{tpu_custom_call.1} parent=0 // loop_exit
    _

</llo_original>
